<compile_context>
chip_gen: v6e
topology: v6e:2x2x1
jax: 0.10.0
libtpu: 0.0.40
codegen_flags: <defaults>
</compile_context>

<pallas_src>
import jax
import jax.numpy as jnp
from jax import lax
from jax.experimental import pallas as pl
from jax.experimental.pallas import tpu as pltpu

# Finite "-inf": exp underflows to exactly 0.  Kept as a *Python* float so the
# kernel does not capture a jax.Array constant (previous trace failure).
_MASK_VALUE = -1e30


def selective_attention_kernel(sizes_ref, bags_ref, rel_ref, out_ref):
    x = bags_ref[...]                       # (Bt, S, H)  compute dtype
    rel = rel_ref[...]                      # (R, H)      compute dtype
    sizes = sizes_ref[...]                  # (Bt, 1, 1)  int32
    Bt, S, H = x.shape
    R = rel.shape[0]

    # ---- scores = bags @ rel^T over the flattened sub-batch: one
    #      (Bt*S, H) x (H, R) MXU matmul instead of Bt tiny (S, H) ones.
    #      (S should be a multiple of 8 for the flatten to be layout-free.)
    scores = lax.dot_general(
        x.reshape(Bt * S, H), rel,
        (((1,), (1,)), ((), ())),           # contract H with H (minor dims)
        preferred_element_type=jnp.float32,
    ).reshape(Bt, S, R)

    # ---- mask sentences past each bag's true length: (Bt,S,1) iota compared
    #      against (Bt,1,1) sizes; jnp.where broadcasts over the R lane axis,
    #      so no (Bt,S,128)-padded iota is materialized.
    sent_idx = lax.broadcasted_iota(jnp.int32, (Bt, S, 1), 1)
    scores = jnp.where(sent_idx < sizes, scores, _MASK_VALUE)
    # NOTE: a real bag with size 0 yields a uniform softmax here; the PyTorch
    # reference would produce NaN.  Padded batch rows are dropped in the wrapper.

    # ---- softmax over the sentence axis (axis=1), f32 throughout.
    m = jnp.max(scores, axis=1, keepdims=True)       # (Bt, 1, R)
    e = jnp.exp(scores - m)                           # (Bt, S, R) f32
    denom = jnp.sum(e, axis=1, keepdims=True)         # (Bt, 1, R)
    e = e * (1.0 / denom)                              # exact reciprocal (tiny array)

    # ---- sent_rep = einsum('bsr,bsh->brh', probs, bags), batched over Bt.
    sent = lax.dot_general(
        e.astype(x.dtype), x,
        (((1,), (1,)), ((0,), (0,))),        # contract S, batch over Bt
        preferred_element_type=jnp.float32,
    )                                        # (Bt, R, H) f32

    out_ref[...] = sent.astype(out_ref.dtype)


def _tpu_vmem_bytes():
    """Physical VMEM per core; conservative (v7x-sized) fallback off-TPU."""
    try:
        return int(pltpu.get_tpu_info().vmem_capacity_bytes)
    except Exception:
        return 64 * 1024 * 1024


def _choose_block_bags(S, H, R, in_itemsize, out_itemsize, budget_bytes):
    """Largest Bt whose per-step VMEM footprint fits the byte budget."""
    fixed = 2 * R * H * in_itemsize                    # relation embeds block
    per_bag = (
        2 * S * H * in_itemsize                        # bags block, double-buffered
        + 2 * R * H * out_itemsize                     # output block, double-buffered
        + 3 * S * max(R, 128) * 4                      # f32 softmax temps (lane-padded)
        + R * max(H, 128) * 4                          # f32 sent accumulator
    )
    return max(1, int((budget_bytes - fixed) // per_bag))


def selective_attention(bags, bags_size, relation_embeds, *, compute_dtype=None,
                        block_bags=None):
    """bags (B,S,H), bags_size (B,), relation_embeds (R,H) -> sent_rep (B,R,H).

    compute_dtype: optional dtype (e.g. jnp.bfloat16) for bags / relations in
    the kernel.  Softmax + matmul accumulation stay in f32 and the output is
    returned in the original bags dtype.  bf16 roughly halves HBM traffic on
    this memory-bound kernel (recommended on v5e / v6e / v7x when tolerable).
    """
    B, S, H = bags.shape
    R, Hr = relation_embeds.shape
    assert Hr == H, "relation_embeds hidden dim must match bags"
    assert bags_size.shape == (B,)

    out_dtype = bags.dtype
    if compute_dtype is not None:
        bags = bags.astype(compute_dtype)
    relation_embeds = relation_embeds.astype(bags.dtype)
    bags_size = bags_size.astype(jnp.int32)
    in_itemsize = bags.dtype.itemsize
    out_itemsize = jnp.dtype(out_dtype).itemsize

    # --- VMEM-budget-derived sub-batch size (dominant lever: biggest tile that
    #     still double-buffers).  Block budget ~3/8 of physical VMEM; scoped
    #     limit raised to ~3/4 of physical (defaults are only 16/32 MiB).
    phys_vmem = _tpu_vmem_bytes()
    if block_bags is None:
        block_bags = _choose_block_bags(S, H, R, in_itemsize, out_itemsize,
                                        (phys_vmem * 3) // 8)
    Bt = max(1, min(int(block_bags), B))
    # v7x has 2 TensorCores: make sure the ("parallel",) grid has >= 2 steps.
    if B >= 2:
        Bt = min(Bt, pl.cdiv(B, 2))
    num_steps = pl.cdiv(B, Bt)
    B_pad = num_steps * Bt

    if B_pad != B:
        pad = B_pad - B
        bags = jnp.pad(bags, ((0, pad), (0, 0), (0, 0)))
        bags_size = jnp.pad(bags_size, ((0, pad),))   # size 0 -> fully masked, dropped below
    sizes3d = bags_size.reshape(B_pad, 1, 1)

    out = pl.pallas_call(
        selective_attention_kernel,
        out_shape=jax.ShapeDtypeStruct((B_pad, R, H), out_dtype),
        grid=(num_steps,),
        in_specs=[
            pl.BlockSpec((Bt, 1, 1), lambda i: (i, 0, 0)),    # bag sizes
            pl.BlockSpec((Bt, S, H), lambda i: (i, 0, 0)),    # bags tile
            pl.BlockSpec((R, H), lambda i: (0, 0)),           # relations (constant block, stays resident)
        ],
        out_specs=pl.BlockSpec((Bt, R, H), lambda i: (i, 0, 0)),
        compiler_params=pltpu.CompilerParams(
            dimension_semantics=("parallel",),                # batch axis shards across TCs
            vmem_limit_bytes=int((phys_vmem * 3) // 4),
        ),
    )(sizes3d, bags, relation_embeds)

    return out[:B]


def selective_attention_ref(bags, bags_size, relation_embeds):
    """Pure-JAX reference mirroring the PyTorch forward."""
    B, S, H = bags.shape
    mask = jnp.arange(S)[None, :, None] < bags_size[:, None, None]       # (B,S,1)
    scores = jnp.einsum('bsh,rh->bsr', bags, relation_embeds)            # (B,S,R)
    scores = jnp.where(mask, scores, -jnp.inf)
    scores = jax.nn.softmax(scores, axis=1)
    return jnp.einsum('bsr,bsh->brh', scores, bags)                      # (B,R,H)


if __name__ == "__main__":
    B, S, H, R = 2, 8, 32, 4

    key = jax.random.PRNGKey(0)
    k_bags, k_rel = jax.random.split(key)
    bags = jax.random.normal(k_bags, (B, S, H), dtype=jnp.float32)
    relation_embeds = jax.random.normal(k_rel, (R, H), dtype=jnp.float32)
    bags_size = jnp.array([5, 8], dtype=jnp.int32)     # actual sentences per bag

    ref = selective_attention_ref(bags, bags_size, relation_embeds)

    # f32 path (tolerance covers default MXU matmul precision differences).
    out = jax.block_until_ready(selective_attention(bags, bags_size, relation_embeds))
    assert out.shape == (B, R, H)
    err = float(jnp.max(jnp.abs(out - ref)))
    assert jnp.allclose(out, ref, atol=2e-2, rtol=2e-2), f"f32 max abs err {err}"

    # bf16 compute path (halves HBM traffic on real workloads); loose smoke check.
    out_bf16 = jax.block_until_ready(
        selective_attention(bags, bags_size, relation_embeds,
                            compute_dtype=jnp.bfloat16))
    assert out_bf16.shape == (B, R, H)
    assert bool(jnp.all(jnp.isfinite(out_bf16)))
    err_bf16 = float(jnp.max(jnp.abs(out_bf16 - ref)))
    assert jnp.allclose(out_bf16, ref, atol=1.5e-1, rtol=1.5e-1), \
        f"bf16 max abs err {err_bf16}"

    print("KERNEL_OK")
</pallas_src>

<mosaic_0001>
module attributes {stable_mosaic.version = 11 : i64} {
  func.func @selective_attention_kernel(%arg0: i32, %arg1: memref<1x1x1xi32, #tpu.memory_space<vmem>>, %arg2: memref<1x8x32xf32, #tpu.memory_space<vmem>>, %arg3: memref<4x32xf32, #tpu.memory_space<vmem>>, %arg4: memref<1x4x32xf32, #tpu.memory_space<vmem>>) attributes {dimension_semantics = [#tpu.dimension_semantics<parallel>], iteration_bounds = array<i64: 2>, scalar_prefetch = 0 : i64, scratch_operands = 0 : i64, tpu.core_type = #tpu.core_type<tc>, window_params = [{transform_indices = @transform_0, window_bounds = array<i64: 1, 1, 1>}, {transform_indices = @transform_1, window_bounds = array<i64: 1, 8, 32>}, {pipeline_mode = #tpu.pipeline_mode<synchronous>, transform_indices = @transform_2, window_bounds = array<i64: 4, 32>}, {transform_indices = @transform_3, window_bounds = array<i64: 1, 4, 32>}]} {
    %c0 = arith.constant 0 : index
    %c0_0 = arith.constant 0 : index
    %c0_1 = arith.constant 0 : index
    %0 = vector.load %arg2[%c0, %c0_0, %c0_1] : memref<1x8x32xf32, #tpu.memory_space<vmem>>, vector<1x8x32xf32>
    %c0_2 = arith.constant 0 : index
    %c0_3 = arith.constant 0 : index
    %1 = vector.load %arg3[%c0_2, %c0_3] : memref<4x32xf32, #tpu.memory_space<vmem>>, vector<4x32xf32>
    %c0_4 = arith.constant 0 : index
    %c0_5 = arith.constant 0 : index
    %c0_6 = arith.constant 0 : index
    %2 = vector.load %arg1[%c0_4, %c0_5, %c0_6] : memref<1x1x1xi32, #tpu.memory_space<vmem>>, vector<1x1x1xi32>
    %3 = vector.shape_cast %0 : vector<1x8x32xf32> to vector<8x32xf32>
    %cst = arith.constant dense<0.000000e+00> : vector<8x4xf32>
    %4 = tpu.matmul %3, %1, %cst {dimension_numbers = #tpu.dot_dimension_numbers<[1], [1], [0], [0], [0, 0, 1, 0], [], []>} : vector<8x32xf32>, vector<4x32xf32>, vector<8x4xf32> -> vector<8x4xf32>
    %5 = vector.shape_cast %4 : vector<8x4xf32> to vector<1x8x4xf32>
    %6 = tpu.iota {dimensions = array<i32: 1>} : vector<1x8x1xi32>
    %7 = vector.broadcast %2 : vector<1x1x1xi32> to vector<1x8x1xi32>
    %8 = arith.cmpi slt, %6, %7 : vector<1x8x1xi32>
    %cst_7 = arith.constant -1.000000e+30 : f32
    %9 = vector.shape_cast %8 : vector<1x8x1xi1> to vector<1x8x1xi1>
    %10 = vector.broadcast %9 : vector<1x8x1xi1> to vector<1x8x4xi1>
    %11 = vector.broadcast %cst_7 : f32 to vector<1x8x4xf32>
    %12 = arith.select %10, %5, %11 : vector<1x8x4xi1>, vector<1x8x4xf32>
    %cst_8 = arith.constant dense<0xFF800000> : vector<1x4xf32>
    %13 = vector.multi_reduction <maximumf>, %12, %cst_8 [1] : vector<1x8x4xf32> to vector<1x4xf32>
    %14 = vector.shape_cast %13 : vector<1x4xf32> to vector<1x1x4xf32>
    %15 = vector.broadcast %14 : vector<1x1x4xf32> to vector<1x8x4xf32>
    %16 = arith.subf %12, %15 : vector<1x8x4xf32>
    %17 = math.exp %16 : vector<1x8x4xf32>
    %cst_9 = arith.constant dense<0.000000e+00> : vector<1x4xf32>
    %18 = vector.multi_reduction <add>, %17, %cst_9 [1] : vector<1x8x4xf32> to vector<1x4xf32>
    %19 = vector.shape_cast %18 : vector<1x4xf32> to vector<1x1x4xf32>
    %cst_10 = arith.constant 1.000000e+00 : f32
    %20 = vector.broadcast %cst_10 : f32 to vector<1x1x4xf32>
    %21 = arith.divf %20, %19 : vector<1x1x4xf32>
    %22 = vector.broadcast %21 : vector<1x1x4xf32> to vector<1x8x4xf32>
    %23 = arith.mulf %17, %22 : vector<1x8x4xf32>
    %cst_11 = arith.constant dense<0.000000e+00> : vector<1x4x32xf32>
    %24 = tpu.matmul %23, %0, %cst_11 {dimension_numbers = #tpu.dot_dimension_numbers<[1], [1], [2], [2], [0, 0, 0, 2, 1, 2], [0], [0]>} : vector<1x8x4xf32>, vector<1x8x32xf32>, vector<1x4x32xf32> -> vector<1x4x32xf32>
    %c0_12 = arith.constant 0 : index
    %c0_13 = arith.constant 0 : index
    %c0_14 = arith.constant 0 : index
    %25 = vector.load %arg4[%c0_12, %c0_13, %c0_14] : memref<1x4x32xf32, #tpu.memory_space<vmem>>, vector<1x4x32xf32>
    tpu.vector_store %arg4[%c0_12, %c0_13, %c0_14], %24 {strides = array<i32>} : memref<1x4x32xf32, #tpu.memory_space<vmem>>, vector<1x4x32xf32>,
    return
  }
  func.func @transform_0(%arg0: i32) -> (i32, i32, i32) {
    %c0_i32 = arith.constant 0 : i32
    %c0_i32_0 = arith.constant 0 : i32
    %c0_i32_1 = arith.constant 0 : i32
    return %arg0, %c0_i32, %c0_i32_0 : i32, i32, i32
  }
  func.func @transform_1(%arg0: i32) -> (i32, i32, i32) {
    %c0_i32 = arith.constant 0 : i32
    %c0_i32_0 = arith.constant 0 : i32
    %c0_i32_1 = arith.constant 0 : i32
    return %arg0, %c0_i32, %c0_i32_0 : i32, i32, i32
  }
  func.func @transform_2(%arg0: i32) -> (i32, i32) {
    %c0_i32 = arith.constant 0 : i32
    %c0_i32_0 = arith.constant 0 : i32
    %c0_i32_1 = arith.constant 0 : i32
    return %c0_i32, %c0_i32_0 : i32, i32
  }
  func.func @transform_3(%arg0: i32) -> (i32, i32, i32) {
    %c0_i32 = arith.constant 0 : i32
    %c0_i32_0 = arith.constant 0 : i32
    %c0_i32_1 = arith.constant 0 : i32
    return %arg0, %c0_i32, %c0_i32_0 : i32, i32, i32
  }
}

</mosaic_0001>

<llo_original>
// kernel: tpu_custom_call.1
$region0: #{tpu_custom_call.1}
  #allocation0 [shape = 'u32[]', space=smem, size = 0x4, offset = 0x4, fixed_abs, tag = 'smem constant byte address 0x4 - core index']
  #allocation1 [shape = 'u32[144,128]{1,0:T(1,128)}', space=vmem, size = 0x12000, scoped, tag = 'internal scratch']
  %s0 = inlined_call_operand.vmem [shape: s32[2,1,1], index: 0, kind: input, shape index: {}]
  %s1 = inlined_call_operand.hbm [shape: f32[2,8,32], index: 1, kind: input, shape index: {}]
  %s2 = inlined_call_operand.vmem [shape: f32[4,32], index: 2, kind: input, shape index: {}]
  %s3 = inlined_call_operand.hbm [shape: f32[2,4,32], index: 3, kind: output, shape index: {}]
  %s4 = sld [smem:[#allocation0]]
  $region49: #{tpu_custom_call.1} parent=0
    _
  %s6 = ssub.s32 1, %s4
  %s7 = scalar_select 0, %s6, %s4
  $region1: #{tpu_custom_call.1} parent=0
    #allocation2 [shape = 'u8[8192]{0}', space=vmem, size = 0x2000, scoped, tag = 'input window, operand 1']
    #allocation3 [shape = 's32[2]{0}', space=sflag, size = 0x8, scoped, tag = 'scoped memory for tpu_custom_call.1']
    #allocation4 [shape = 's32[2]{0}', space=sflag, size = 0x8, scoped, tag = 'scoped memory for tpu_custom_call.1']
    #allocation5 [shape = 'u8[4096]{0}', space=vmem, size = 0x1000, scoped, tag = 'output window, operand 0']
    %8 = vsyncpa [#allocation3], 0
    %s9 = scalar_lea.sflag [#allocation3], 1
    %10 = vsyncpa %s9, 0
    %11 = vsyncpa [#allocation4], 0
    %s12 = scalar_lea.sflag [#allocation4], 1
    %13 = vsyncpa %s12, 0
    loop: start=0, step=1, limit=4
    $region2: #{tpu_custom_call.1} parent=1 // loop_pre_header
      _
    $region3: #{tpu_custom_call.1} parent=1 // loop_header
      %s15 = sphi 0, %s19
      %p16 = scmp.ge.s32.totalorder %s15, 4
      %s25 = sphi 0, %s27
      %s28 = sphi 0, %s25
      %s29 = sphi 0, %s28
      %s45 = sphi 0, %s29
      %s51 = sphi 0, %s53
      %s54 = sphi 0, %s51
      %s55 = sphi 0, %s54
      %s71 = sphi 0, %s55
      %s75 = sphi 0, %s75
      %s77 = sphi 0, %s75
      %s78 = sphi 0, %s77
      %s92 = sphi 0, %s78
      %s98 = sphi 0, %s100
      %s101 = sphi 0, %s98
      %s102 = sphi 0, %s101
      %s118 = sphi 0, %s102
    $region4: #{tpu_custom_call.1} parent=1 // loop_header_branch
      %18 = sbr.rel (%p16) target = $region8
    $region5: #{tpu_custom_call.1} parent=1 // loop_body
      %s20 = ssub.s32 %s15, 1
      %s21 = ssub.s32 %s15, 2
      %s22 = sadd.s32 %s15, 1
      %s23 = ssub.s32 %s15, %s22
      %p24 = scmp.eq.s32.totalorder %s23, 0
      %s26 = sadd.s32 %s25, 1
      %s27 = scalar_select %p24, %s25, %s26
      %p30 = pneg %p24
      %p31 = scmp.eq.s32.totalorder %s15, 1
      %p32 = por %p30, %p31
      %p33 = scmp.ne.s32.totalorder %s25, %s28
      %p34 = scmp.eq.s32.totalorder %s15, 0
      %p35 = por %p33, %p34
      %p36 = scmp.ne.s32.totalorder %s25, %s28
      %p37 = scmp.eq.s32.totalorder %s20, 1
      %p38 = por %p36, %p37
      %p39 = scmp.ne.s32.totalorder %s28, %s29
      %p40 = scmp.eq.s32.totalorder %s20, 0
      %p41 = por %p39, %p40
      %p42 = scmp.ne.s32.totalorder %s28, %s29
      %p43 = scmp.eq.s32.totalorder %s21, 1
      %p44 = por %p42, %p43
      %p46 = scmp.ne.s32.totalorder %s29, %s45
      %p47 = scmp.eq.s32.totalorder %s21, 0
      %p48 = por %p46, %p47
      %s49 = ssub.s32 %s15, %s22
      %p50 = scmp.eq.s32.totalorder %s49, 0
      %s52 = sadd.s32 %s51, 1
      %s53 = scalar_select %p50, %s51, %s52
      %p56 = pneg %p50
      %p57 = scmp.eq.s32.totalorder %s15, 1
      %p58 = por %p56, %p57
      %p59 = scmp.ne.s32.totalorder %s51, %s54
      %p60 = scmp.eq.s32.totalorder %s15, 0
      %p61 = por %p59, %p60
      %p62 = scmp.ne.s32.totalorder %s51, %s54
      %p63 = scmp.eq.s32.totalorder %s20, 1
      %p64 = por %p62, %p63
      %p65 = scmp.ne.s32.totalorder %s54, %s55
      %p66 = scmp.eq.s32.totalorder %s20, 0
      %p67 = por %p65, %p66
      %p68 = scmp.ne.s32.totalorder %s54, %s55
      %p69 = scmp.eq.s32.totalorder %s21, 1
      %p70 = por %p68, %p69
      %p72 = scmp.ne.s32.totalorder %s55, %s71
      %p73 = scmp.eq.s32.totalorder %s21, 0
      %p74 = por %p72, %p73
      %s76 = sadd.s32 %s75, 1
      %p79 = scmp.eq.s32.totalorder %s15, 1
      %p80 = scmp.ne.s32.totalorder %s75, %s77
      %p81 = scmp.eq.s32.totalorder %s15, 0
      %p82 = por %p80, %p81
      %p83 = scmp.ne.s32.totalorder %s75, %s77
      %p84 = scmp.eq.s32.totalorder %s20, 1
      %p85 = por %p83, %p84
      %p86 = scmp.ne.s32.totalorder %s77, %s78
      %p87 = scmp.eq.s32.totalorder %s20, 0
      %p88 = por %p86, %p87
      %p89 = scmp.ne.s32.totalorder %s77, %s78
      %p90 = scmp.eq.s32.totalorder %s21, 1
      %p91 = por %p89, %p90
      %p93 = scmp.ne.s32.totalorder %s78, %s92
      %p94 = scmp.eq.s32.totalorder %s21, 0
      %p95 = por %p93, %p94
      %s96 = ssub.s32 %s15, %s22
      %p97 = scmp.eq.s32.totalorder %s96, 0
      %s99 = sadd.s32 %s98, 1
      %s100 = scalar_select %p97, %s98, %s99
      %p103 = pneg %p97
      %p104 = scmp.eq.s32.totalorder %s15, 1
      %p105 = por %p103, %p104
      %p106 = scmp.ne.s32.totalorder %s98, %s101
      %p107 = scmp.eq.s32.totalorder %s15, 0
      %p108 = por %p106, %p107
      %p109 = scmp.ne.s32.totalorder %s98, %s101
      %p110 = scmp.eq.s32.totalorder %s20, 1
      %p111 = por %p109, %p110
      %p112 = scmp.ne.s32.totalorder %s101, %s102
      %p113 = scmp.eq.s32.totalorder %s20, 0
      %p114 = por %p112, %p113
      %p115 = scmp.ne.s32.totalorder %s101, %s102
      %p116 = scmp.eq.s32.totalorder %s21, 1
      %p117 = por %p115, %p116
      %p119 = scmp.ne.s32.totalorder %s102, %s118
      %p120 = scmp.eq.s32.totalorder %s21, 0
      %p121 = por %p119, %p120
      %p122 = scmp.le.s32.totalorder 1, %s15
      %p123 = scmp.lt.s32.totalorder %s15, 3
      %p124 = pnand %p122, %p123
      %p125 = pneg %p124
      // Predicated region
      $region9: #{tpu_custom_call.1} parent=5 // pred_check
        _
      $region10: #{tpu_custom_call.1} parent=5 // pred_check_branch
        %127 = sbr.rel (%p124) target = $region12
      $region11: #{tpu_custom_call.1} parent=5 // pred_region
        %s128 = ssub.s32 %s15, 1
        // Predicated region
        $region13: #{tpu_custom_call.1} parent=11 // pred_check
          %p129 = pneg %p88
        $region14: #{tpu_custom_call.1} parent=11 // pred_check_branch
          %131 = sbr.rel (%p129) target = $region16
        $region15: #{tpu_custom_call.1} parent=11 // pred_region
          _
        $region16: #{tpu_custom_call.1} parent=11 // pred_fallthru
          _
      $region12: #{tpu_custom_call.1} parent=5 // pred_fallthru
        _
      %p132 = scmp.lt.s32.totalorder %s15, 2
      // Predicated region
      $region17: #{tpu_custom_call.1} parent=5 // pred_check
        %p133 = pneg %p132
      $region18: #{tpu_custom_call.1} parent=5 // pred_check_branch
        %135 = sbr.rel (%p133) target = $region20
      $region19: #{tpu_custom_call.1} parent=5 // pred_region
        // Predicated region
        $region21: #{tpu_custom_call.1} parent=19 // pred_check
          %p136 = pneg %p35
        $region22: #{tpu_custom_call.1} parent=19 // pred_check_branch
          %138 = sbr.rel (%p136) target = $region24
        $region23: #{tpu_custom_call.1} parent=19 // pred_region
          %p139 = scmp.lt.s32.totalorder %s15, 1
          %s140 = scalar_select %p139, %s15, 1
          %s141 = scalar_lea.vmem %s0, %s140
        $region24: #{tpu_custom_call.1} parent=19 // pred_fallthru
          _
        // Predicated region
        $region25: #{tpu_custom_call.1} parent=19 // pred_check
          %p142 = pneg %p61
        $region26: #{tpu_custom_call.1} parent=19 // pred_check_branch
          %144 = sbr.rel (%p142) target = $region28
        $region27: #{tpu_custom_call.1} parent=19 // pred_region
          %s145 = sand.u32 %s51, 1
          %s146 = scalar_lea.sflag [#allocation3], %s145
          %s147 = sand.u32 %s51, 1
          %s148 = smul.addr %s147, 8
          %s149 = scalar_lea.vmem [#allocation2], %s148
          %s151 = ssub.s32 128, 128
          %152 = vsyncadd %s146, %s151
          %s153 = smul.addr %s15, 128
          %s154 = scalar_lea.hbm %s1, %s153
          %s156 = sshll.u32 %s149, 4
          %s157 = int_to_ptr.vmem [resolvable:$true] %s156
          %159 = dma.hbm_to_vmem [thread:$0]  %s154, 128, %s157, %s146
        $region28: #{tpu_custom_call.1} parent=19 // pred_fallthru
          _
      $region20: #{tpu_custom_call.1} parent=5 // pred_fallthru
        _
      %p160 = scmp.le.s32.totalorder 1, %s15
      %p161 = scmp.lt.s32.totalorder %s15, 3
      %p162 = pnand %p160, %p161
      %p163 = pneg %p162
      // Predicated region
      $region29: #{tpu_custom_call.1} parent=5 // pred_check
        _
      $region30: #{tpu_custom_call.1} parent=5 // pred_check_branch
        %165 = sbr.rel (%p162) target = $region32
      $region31: #{tpu_custom_call.1} parent=5 // pred_region
        %s166 = ssub.s32 %s15, 1
        %s167 = sand.u32 %s54, 1
        %s168 = scalar_lea.sflag [#allocation3], %s167
        %s169 = sand.u32 %s54, 1
        %s170 = smul.addr %s169, 8
        %s171 = scalar_lea.vmem [#allocation2], %s170
        // Predicated region
        $region33: #{tpu_custom_call.1} parent=31 // pred_check
          %p172 = pneg %p67
        $region34: #{tpu_custom_call.1} parent=31 // pred_check_branch
          %174 = sbr.rel (%p172) target = $region36
        $region35: #{tpu_custom_call.1} parent=31 // pred_region
          %175 = dma.done %s168, 128
        $region36: #{tpu_custom_call.1} parent=31 // pred_fallthru
          _
        %p176 = scmp.lt.s32.totalorder %s20, 1
        %s177 = scalar_select %p176, %s20, 1
        %s178 = scalar_lea.vmem %s0, %s177
        %p179 = pneg %p41
        %p180 = pneg %p38
        %s181 = sand.u32 %s54, 1
        %s182 = scalar_lea.sflag [#allocation3], %s181
        %s183 = sand.u32 %s54, 1
        %s184 = smul.addr %s183, 8
        %s185 = scalar_lea.vmem [#allocation2], %s184
        %p186 = pneg %p67
        %p187 = pneg %p64
        %p188 = pneg %p88
        %p189 = pneg %p85
        %p190 = pneg %p114
        %p191 = pneg %p111
        %s192 = sand.u32 %s101, 1
        %s193 = scalar_lea.sflag [#allocation4], %s192
        %s194 = sand.u32 %s101, 1
        %s195 = smul.addr %s194, 4
        %s196 = scalar_lea.vmem [#allocation5], %s195
        %p197 = scmp.lt.s32.totalorder %s20, 1
        %s198 = scalar_select %p197, %s20, 1
        %s199 = scalar_lea.vmem %s0, %s198
        %v200 = vld [vmem:[%s171] sm:$0xff]
        %v201 = vld [vmem:[%s2] sm:$0xf]
        %v202 = vld [vmem:[%s199] sm:$0x1]
        %vm203 = vcmask 261120
        %v205 = vsel %vm203, %v200, 0
        %v208 = vsel %vm203, %v201, 0
        %210 = vmatprep.subr.mxu0 0.0
        %211 = vmatpush1.xpose.msra.mxu0 0.0
        %212 = vmatprep.subr.mxu0 0.0
        %213 = vmatpush1.xpose.msra.mxu0 0.0
        %214 = vmatprep.subr.mxu0 0.0
        %215 = vmatpush1.xpose.msra.mxu0 0.0
        %216 = vmatprep.subr.mxu0 0.0
        %217 = vmatpush1.xpose.msra.mxu0 0.0
        %218 = vmatprep.subr.mxu0 0.0
        %219 = vmatpush1.xpose.msra.mxu0 0.0
        %220 = vmatprep.subr.mxu0 0.0
        %221 = vmatpush1.xpose.msra.mxu0 0.0
        %222 = vmatprep.subr.mxu0 0.0
        %223 = vmatpush1.xpose.msra.mxu0 0.0
        %224 = vmatprep.subr.mxu0 0.0
        %225 = vmatpush1.xpose.msra.mxu0 0.0
        %226 = vmatprep.subr.mxu0 0.0
        %227 = vmatpush1.xpose.msra.mxu0 0.0
        %228 = vmatprep.subr.mxu0 0.0
        %229 = vmatpush1.xpose.msra.mxu0 0.0
        %230 = vmatprep.subr.mxu0 0.0
        %231 = vmatpush1.xpose.msra.mxu0 0.0
        %232 = vmatprep.subr.mxu0 0.0
        %233 = vmatpush1.xpose.msra.mxu0 0.0
        %234 = vmatprep.subr.mxu0 0.0
        %235 = vmatpush1.xpose.msra.mxu0 0.0
        %236 = vmatprep.subr.mxu0 0.0
        %237 = vmatpush1.xpose.msra.mxu0 0.0
        %238 = vmatprep.subr.mxu0 0.0
        %239 = vmatpush1.xpose.msra.mxu0 0.0
        %240 = vmatprep.subr.mxu0 0.0
        %241 = vmatpush1.xpose.msra.mxu0 %v208
        %242 = vmatprep.subr.mxu0 0.0
        %243 = vmatpush2.xpose.msra.mxu0 0.0
        %244 = vmatprep.subr.mxu0 0.0
        %245 = vmatpush2.xpose.msra.mxu0 0.0
        %246 = vmatprep.subr.mxu0 0.0
        %247 = vmatpush2.xpose.msra.mxu0 0.0
        %248 = vmatprep.subr.mxu0 0.0
        %249 = vmatpush2.xpose.msra.mxu0 0.0
        %250 = vmatprep.subr.mxu0 0.0
        %251 = vmatpush2.xpose.msra.mxu0 0.0
        %252 = vmatprep.subr.mxu0 0.0
        %253 = vmatpush2.xpose.msra.mxu0 0.0
        %254 = vmatprep.subr.mxu0 0.0
        %255 = vmatpush2.xpose.msra.mxu0 0.0
        %256 = vmatprep.subr.mxu0 0.0
        %257 = vmatpush2.xpose.msra.mxu0 0.0
        %258 = vmatprep.subr.mxu0 0.0
        %259 = vmatpush2.xpose.msra.mxu0 0.0
        %260 = vmatprep.subr.mxu0 0.0
        %261 = vmatpush2.xpose.msra.mxu0 0.0
        %262 = vmatprep.subr.mxu0 0.0
        %263 = vmatpush2.xpose.msra.mxu0 0.0
        %264 = vmatprep.subr.mxu0 0.0
        %265 = vmatpush2.xpose.msra.mxu0 0.0
        %266 = vmatprep.subr.mxu0 0.0
        %267 = vmatpush2.xpose.msra.mxu0 0.0
        %268 = vmatprep.subr.mxu0 0.0
        %269 = vmatpush2.xpose.msra.mxu0 0.0
        %270 = vmatprep.subr.mxu0 0.0
        %271 = vmatpush2.xpose.msra.mxu0 0.0
        %272 = vmatprep.subr.mxu0 0.0
        %273 = vmatpush2.xpose.msra.mxu0 0.0
        %274 = vmatprep.mubr.f32.mxu0 0.0
        %275 = vmatmul.mubr.f32.gmra.mxu0 %v205
        %v276 = vpop.f32.mrf.mxu0
        %v277 = vadd.f32 0.0, %v276
        %v278 = vpop.f32.mrf.mxu0
        %279 = vdwg.mxu0
        %v280 = vlaneseq
        %v281 = vshrl.u32 %v280, 7
        %v282 = vlaneseq
        %v283 = vshrl.u32 %v282, 7
        %v284 = vsub.s32 0, %v283
        %v285 = vrot.slane %v202, %v284
        %vm286 = vcmp.lt.s32.totalorder %v281, %v285
        %v287 = vsel %vm286, 1, 0
        %288 = vset.pattern.permute.xlu0 0
        %289 = vperm.xlu0 %288, %v287
        %v290 = vpop.permute.xlu0 %289
        %vm291 = vcmp.eq.s32.totalorder %v290, 1
        %v292 = vsel %vm291, %v277, -1e+30
        %vm293 = vcmask 31744
        %v294 = vsel %vm293, %v292, -inf
        %v295 = vrot.slane %v294, 4
        %v296 = vmax.f32 %v294, %v295
        %v297 = vrot.slane %v296, 2
        %v298 = vmax.f32 %v296, %v297
        %v299 = vrot.slane %v298, 1
        %v300 = vmax.f32 %v298, %v299
        %v301 = vsub.f32 %v292, %v300
        %v302 = vmul.f32 %v301, 1.442695
        %v303 = vpow.pop %v302
        %v304 = vsel %vm293, %v303, 0.0
        %v305 = vrot.slane %v304, 4
        %v306 = vadd.f32 %v304, %v305
        %v307 = vrot.slane %v306, 2
        %v308 = vadd.f32 %v306, %v307
        %v309 = vrot.slane %v308, 1
        %v310 = vadd.f32 %v308, %v309
        %v311 = vrcp.pop %v310
        %v312 = vmul.f32 1.0, %v311
        %v313 = vmul.f32 %v303, %v312
        %314 = vxpose.xlu0.b32.start [1/16] %v313, 128
        %315 = vxpose.xlu0.b32.cont [2/16] 0.0, 128
        %316 = vxpose.xlu0.b32.cont [3/16] 0.0, 128
        %317 = vxpose.xlu0.b32.cont [4/16] 0.0, 128
        %318 = vxpose.xlu0.b32.cont [5/16] 0.0, 128
        %319 = vxpose.xlu0.b32.cont [6/16] 0.0, 128
        %320 = vxpose.xlu0.b32.cont [7/16] 0.0, 128
        %321 = vxpose.xlu0.b32.cont [8/16] 0.0, 128
        %322 = vxpose.xlu0.b32.cont [9/16] 0.0, 128
        %323 = vxpose.xlu0.b32.cont [10/16] 0.0, 128
        %324 = vxpose.xlu0.b32.cont [11/16] 0.0, 128
        %325 = vxpose.xlu0.b32.cont [12/16] 0.0, 128
        %326 = vxpose.xlu0.b32.cont [13/16] 0.0, 128
        %327 = vxpose.xlu0.b32.cont [14/16] 0.0, 128
        %328 = vxpose.xlu0.b32.cont [15/16] 0.0, 128
        %329 = vxpose.xlu0.b32.end [16/16] 0.0, 128
        %v330 = vpop.trf.xlu0
        %v331 = vpop.trf.xlu0
        %v332 = vpop.trf.xlu0
        %v333 = vpop.trf.xlu0
        %v334 = vpop.trf.xlu0
        %v335 = vpop.trf.xlu0
        %v336 = vpop.trf.xlu0
        %v337 = vpop.trf.xlu0
        %v338 = vpop.trf.xlu0
        %v339 = vpop.trf.xlu0
        %v340 = vpop.trf.xlu0
        %v341 = vpop.trf.xlu0
        %v342 = vpop.trf.xlu0
        %v343 = vpop.trf.xlu0
        %v344 = vpop.trf.xlu0
        %v345 = vpop.trf.xlu0
        %vm346 = vcmask 64512
        %v348 = vsel %vm346, %v330, 0
        %350 = vmatprep.subr.mxu0 0.0
        %351 = vmatpush1.msra.mxu0 0.0
        %352 = vmatprep.subr.mxu0 0.0
        %353 = vmatpush1.msra.mxu0 0.0
        %354 = vmatprep.subr.mxu0 0.0
        %355 = vmatpush1.msra.mxu0 0.0
        %356 = vmatprep.subr.mxu0 0.0
        %357 = vmatpush1.msra.mxu0 0.0
        %358 = vmatprep.subr.mxu0 0.0
        %359 = vmatpush1.msra.mxu0 0.0
        %360 = vmatprep.subr.mxu0 0.0
        %361 = vmatpush1.msra.mxu0 0.0
        %362 = vmatprep.subr.mxu0 0.0
        %363 = vmatpush1.msra.mxu0 0.0
        %364 = vmatprep.subr.mxu0 0.0
        %365 = vmatpush1.msra.mxu0 0.0
        %366 = vmatprep.subr.mxu0 0.0
        %367 = vmatpush1.msra.mxu0 0.0
        %368 = vmatprep.subr.mxu0 0.0
        %369 = vmatpush1.msra.mxu0 0.0
        %370 = vmatprep.subr.mxu0 0.0
        %371 = vmatpush1.msra.mxu0 0.0
        %372 = vmatprep.subr.mxu0 0.0
        %373 = vmatpush1.msra.mxu0 0.0
        %374 = vmatprep.subr.mxu0 0.0
        %375 = vmatpush1.msra.mxu0 0.0
        %376 = vmatprep.subr.mxu0 0.0
        %377 = vmatpush1.msra.mxu0 0.0
        %378 = vmatprep.subr.mxu0 0.0
        %379 = vmatpush1.msra.mxu0 0.0
        %380 = vmatprep.subr.mxu0 0.0
        %381 = vmatpush1.msra.mxu0 %v200
        %382 = vmatprep.subr.mxu0 0.0
        %383 = vmatpush2.msra.mxu0 0.0
        %384 = vmatprep.subr.mxu0 0.0
        %385 = vmatpush2.msra.mxu0 0.0
        %386 = vmatprep.subr.mxu0 0.0
        %387 = vmatpush2.msra.mxu0 0.0
        %388 = vmatprep.subr.mxu0 0.0
        %389 = vmatpush2.msra.mxu0 0.0
        %390 = vmatprep.subr.mxu0 0.0
        %391 = vmatpush2.msra.mxu0 0.0
        %392 = vmatprep.subr.mxu0 0.0
        %393 = vmatpush2.msra.mxu0 0.0
        %394 = vmatprep.subr.mxu0 0.0
        %395 = vmatpush2.msra.mxu0 0.0
        %396 = vmatprep.subr.mxu0 0.0
        %397 = vmatpush2.msra.mxu0 0.0
        %398 = vmatprep.subr.mxu0 0.0
        %399 = vmatpush2.msra.mxu0 0.0
        %400 = vmatprep.subr.mxu0 0.0
        %401 = vmatpush2.msra.mxu0 0.0
        %402 = vmatprep.subr.mxu0 0.0
        %403 = vmatpush2.msra.mxu0 0.0
        %404 = vmatprep.subr.mxu0 0.0
        %405 = vmatpush2.msra.mxu0 0.0
        %406 = vmatprep.subr.mxu0 0.0
        %407 = vmatpush2.msra.mxu0 0.0
        %408 = vmatprep.subr.mxu0 0.0
        %409 = vmatpush2.msra.mxu0 0.0
        %410 = vmatprep.subr.mxu0 0.0
        %411 = vmatpush2.msra.mxu0 0.0
        %412 = vmatprep.subr.mxu0 0.0
        %413 = vmatpush2.msra.mxu0 0.0
        %414 = vmatprep.mubr.f32.mxu0 0.0
        %415 = vmatmul.mubr.f32.gmra.mxu0 %v348
        %v416 = vpop.f32.mrf.mxu0
        %v417 = vadd.f32 0.0, %v416
        %v418 = vpop.f32.mrf.mxu0
        %419 = vdwg.mxu0
        %vm420 = vcmask 257024
        %421 = vst.msk [vmem:[%s196] sm:$0xf] %vm420, %v417
        %s422 = sand.u32 %s101, 1
        %s423 = scalar_lea.sflag [#allocation4], %s422
        %s424 = sand.u32 %s101, 1
        %s425 = smul.addr %s424, 4
        %s426 = scalar_lea.vmem [#allocation5], %s425
        // Predicated region
        $region37: #{tpu_custom_call.1} parent=31 // pred_check
          %p427 = pneg %p111
        $region38: #{tpu_custom_call.1} parent=31 // pred_check_branch
          %429 = sbr.rel (%p427) target = $region40
        $region39: #{tpu_custom_call.1} parent=31 // pred_region
          %s431 = ssub.s32 64, 64
          %432 = vsyncadd %s423, %s431
          %s433 = smul.addr %s20, 64
          %s434 = scalar_lea.hbm %s3, %s433
          %s436 = sshll.u32 %s426, 4
          %s437 = int_to_ptr.vmem [resolvable:$true] %s436
          %439 = dma.vmem_to_hbm [thread:$0]  %s437, 64, %s434, %s423
        $region40: #{tpu_custom_call.1} parent=31 // pred_fallthru
          _
      $region32: #{tpu_custom_call.1} parent=5 // pred_fallthru
        _
      %p440 = scmp.le.s32.totalorder 2, %s15
      // Predicated region
      $region41: #{tpu_custom_call.1} parent=5 // pred_check
        %p441 = pneg %p440
      $region42: #{tpu_custom_call.1} parent=5 // pred_check_branch
        %443 = sbr.rel (%p441) target = $region44
      $region43: #{tpu_custom_call.1} parent=5 // pred_region
        %s444 = ssub.s32 %s15, 2
        // Predicated region
        $region45: #{tpu_custom_call.1} parent=43 // pred_check
          %p445 = pneg %p117
        $region46: #{tpu_custom_call.1} parent=43 // pred_check_branch
          %447 = sbr.rel (%p445) target = $region48
        $region47: #{tpu_custom_call.1} parent=43 // pred_region
          %s448 = sand.u32 %s102, 1
          %s449 = scalar_lea.sflag [#allocation4], %s448
          %s450 = sand.u32 %s102, 1
          %s451 = smul.addr %s450, 4
          %s452 = scalar_lea.vmem [#allocation5], %s451
          %453 = dma.done %s449, 64
        $region48: #{tpu_custom_call.1} parent=43 // pred_fallthru
          _
      $region44: #{tpu_custom_call.1} parent=5 // pred_fallthru
        _
    $region6: #{tpu_custom_call.1} parent=1 // loop_footer
      %s19 = sadd.s32 1, %s15
    $region7: #{tpu_custom_call.1} parent=1 // loop_footer_branch
      %14 = sbr.rel target = $region3
    $region8: #{tpu_custom_call.1} parent=1 // loop_exit
      _
    %454 = vsyncpa [#allocation3], 1
    %s455 = scalar_lea.sflag [#allocation3], 1
    %456 = vsyncpa %s455, 1
    %457 = vsyncpa [#allocation4], 1
    %s458 = scalar_lea.sflag [#allocation4], 1
    %459 = vsyncpa %s458, 1

</llo_original>
